<compile_context>
chip_gen: v7x
topology: tpu7x:2x2x1
jax: 0.10.0
libtpu: 0.0.40
codegen_flags: <defaults>
</compile_context>

<pallas_src>
import jax
import jax.numpy as jnp
from jax import lax
from jax.experimental import pallas as pl
from jax.experimental.pallas import tpu as pltpu


def _attention_kernel(x_ref, wq_ref, wk_ref, wv_ref, wp_ref, b_ref,
                      o_ref, acc_ref):
    """One (batch, head) grid step.

    x_ref : (1, N, Cp)   matmul dtype (bf16 or f32), zero-padded channels
    wq/wk/wv_ref : (1, Cp, hd)   per-head projection weights (wq pre-scaled)
    wp_ref : (1, hd, Cp)  per-head slice of the output projection
    b_ref  : (1, Cp)      f32 projection bias (zero-padded)
    o_ref  : (1, N, Cp)   output block (resident across the head axis)
    acc_ref: (N, Cp)      f32 accumulator scratch
    """
    h = pl.program_id(1)
    last_h = pl.num_programs(1) - 1
    mm = x_ref.dtype  # matmul operand dtype (bf16 on the fast path)

    x = x_ref[0]  # (N, Cp)

    # Per-head projections; MXU accumulates in f32.
    q = jnp.dot(x, wq_ref[0], preferred_element_type=jnp.float32)  # (N, hd), scale folded in
    k = jnp.dot(x, wk_ref[0], preferred_element_type=jnp.float32)  # (N, hd)
    v = jnp.dot(x, wv_ref[0], preferred_element_type=jnp.float32)  # (N, hd)

    # logits = q @ k^T, expressed as a dot_general contracting the last dim of
    # both operands (no explicit in-kernel transpose of k).
    logits = lax.dot_general(
        q.astype(mm), k.astype(mm),
        dimension_numbers=(((1,), (1,)), ((), ())),
        preferred_element_type=jnp.float32)                         # (N, N) f32

    # Softmax in f32 (v5e has no bf16 VPU/EUP); approximate reciprocal on EUP.
    logits = logits - jnp.max(logits, axis=-1, keepdims=True)
    p = jnp.exp(logits)
    p = p * pl.reciprocal(jnp.sum(p, axis=-1, keepdims=True), approx=True)

    # attn @ v, then this head's contribution to the output projection.
    ctx = jnp.dot(p.astype(mm), v.astype(mm),
                  preferred_element_type=jnp.float32)                # (N, hd)
    contrib = jnp.dot(ctx.astype(mm), wp_ref[0],
                      preferred_element_type=jnp.float32)            # (N, Cp)

    @pl.when(h == 0)
    def _():
        acc_ref[...] = jnp.zeros_like(acc_ref)

    acc_ref[...] += contrib

    @pl.when(h == last_h)
    def _():
        o_ref[0] = (acc_ref[...] + b_ref[...]).astype(o_ref.dtype)


def attention_pallas(x, w_qkv, w_proj, b_proj, *, num_heads,
                     matmul_dtype=jnp.bfloat16):
    """ViT Attention forward. attn_drop / proj_drop are p=0.0 -> identity."""
    B, N, C = x.shape
    assert C % num_heads == 0, "dim must be divisible by num_heads"
    hd = C // num_heads
    scale = hd ** (-0.5)

    # Lane-dense feature dim: pad C up to a multiple of 128 (zero padding is
    # mathematically inert; output is sliced back outside the kernel).
    Cp = ((C + 127) // 128) * 128
    pad_c = Cp - C

    # ---- one-time weight massaging in the wrapper (plain XLA, not per-step) ----
    # nn.Linear weight is (out, in). PyTorch's reshape(B,N,3,H,hd) means the 3C
    # output axis decomposes as (3, H, hd).
    w3 = w_qkv.reshape(3, num_heads, hd, C).transpose(0, 1, 3, 2)   # (3, H, C, hd)
    wq = w3[0] * scale                                              # fold q-scale
    wk = w3[1]
    wv = w3[2]
    wq = jnp.pad(wq, ((0, 0), (0, pad_c), (0, 0))).astype(matmul_dtype)
    wk = jnp.pad(wk, ((0, 0), (0, pad_c), (0, 0))).astype(matmul_dtype)
    wv = jnp.pad(wv, ((0, 0), (0, pad_c), (0, 0))).astype(matmul_dtype)

    # Output projection split per head: out = sum_h ctx_h @ wp[h] + b.
    wp = w_proj.T.reshape(num_heads, hd, C)                         # (H, hd, C)
    wp = jnp.pad(wp, ((0, 0), (0, 0), (0, pad_c))).astype(matmul_dtype)
    bp = jnp.pad(b_proj, (0, pad_c)).reshape(1, Cp).astype(jnp.float32)

    xp = jnp.pad(x, ((0, 0), (0, 0), (0, pad_c))).astype(matmul_dtype)

    out_p = pl.pallas_call(
        _attention_kernel,
        out_shape=jax.ShapeDtypeStruct((B, N, Cp), x.dtype),
        grid_spec=pltpu.PrefetchScalarGridSpec(
            num_scalar_prefetch=0,
            grid=(B, num_heads),                     # head axis = reduction, last
            in_specs=[
                pl.BlockSpec((1, N, Cp), lambda b, h: (b, 0, 0)),   # x
                pl.BlockSpec((1, Cp, hd), lambda b, h: (h, 0, 0)),  # wq (scaled)
                pl.BlockSpec((1, Cp, hd), lambda b, h: (h, 0, 0)),  # wk
                pl.BlockSpec((1, Cp, hd), lambda b, h: (h, 0, 0)),  # wv
                pl.BlockSpec((1, hd, Cp), lambda b, h: (h, 0, 0)),  # wproj slice
                pl.BlockSpec((1, Cp), lambda b, h: (0, 0)),         # bias
            ],
            out_specs=pl.BlockSpec((1, N, Cp), lambda b, h: (b, 0, 0)),
            scratch_shapes=[pltpu.VMEM((N, Cp), jnp.float32)],
        ),
        compiler_params=pltpu.CompilerParams(
            dimension_semantics=("parallel", "arbitrary"),
            vmem_limit_bytes=32 * 1024 * 1024,       # explicit budget (v7x-safe)
        ),
    )(xp, wq, wk, wv, wp, bp)

    return out_p[:, :, :C]


def attention_reference(x, w_qkv, w_proj, b_proj, *, num_heads):
    """Pure-JAX f32 reference matching the PyTorch forward exactly."""
    B, N, C = x.shape
    hd = C // num_heads
    scale = hd ** (-0.5)
    qkv = x @ w_qkv.T                                   # (B, N, 3C)
    qkv = qkv.reshape(B, N, 3, num_heads, hd).transpose(2, 0, 3, 1, 4)
    q, k, v = qkv[0], qkv[1], qkv[2]                    # (B, H, N, hd)
    q = q * scale
    attn = q @ jnp.swapaxes(k, -2, -1)                  # (B, H, N, N)
    attn = jax.nn.softmax(attn, axis=-1)
    out = (attn @ v).transpose(0, 2, 1, 3).reshape(B, N, C)
    return out @ w_proj.T + b_proj


if __name__ == "__main__":
    # Small shapes consistent with the module: dim divisible by num_heads=6.
    B, N, C = 2, 8, 48
    num_heads = 6

    key = jax.random.PRNGKey(0)
    kx, kqkv, kproj, kb = jax.random.split(key, 4)

    x = jax.random.normal(kx, (B, N, C), dtype=jnp.float32)
    # Deterministic synthetic params (nn.Linear weight shape: (out, in)).
    w_qkv = jax.random.normal(kqkv, (3 * C, C), dtype=jnp.float32) * 0.05  # qkv_bias=False
    w_proj = jax.random.normal(kproj, (C, C), dtype=jnp.float32) * 0.05
    b_proj = jax.random.normal(kb, (C,), dtype=jnp.float32) * 0.05

    ref = attention_reference(x, w_qkv, w_proj, b_proj, num_heads=num_heads)

    # f32 matmul path: only deviation from the reference is the EUP approximate
    # reciprocal in the softmax normalization.
    out_f32 = attention_pallas(x, w_qkv, w_proj, b_proj, num_heads=num_heads,
                               matmul_dtype=jnp.float32)
    out_f32 = jax.block_until_ready(out_f32)
    assert out_f32.shape == (B, N, C)
    assert jnp.allclose(out_f32, ref, atol=2e-3, rtol=2e-3), "f32 path mismatch"

    # bf16 matmul path (default, the perf-optimized configuration).
    out_bf16 = attention_pallas(x, w_qkv, w_proj, b_proj, num_heads=num_heads,
                                matmul_dtype=jnp.bfloat16)
    out_bf16 = jax.block_until_ready(out_bf16)
    assert out_bf16.shape == (B, N, C)
    assert jnp.allclose(out_bf16, ref, atol=3e-2, rtol=3e-2), "bf16 path mismatch"

    print("KERNEL_OK")
</pallas_src>

<mosaic_0001>
module attributes {stable_mosaic.version = 11 : i64} {
  func.func @_attention_kernel(%arg0: i32, %arg1: i32, %arg2: memref<1x8x128xf32, #tpu.memory_space<vmem>>, %arg3: memref<1x128x8xf32, #tpu.memory_space<vmem>>, %arg4: memref<1x128x8xf32, #tpu.memory_space<vmem>>, %arg5: memref<1x128x8xf32, #tpu.memory_space<vmem>>, %arg6: memref<1x8x128xf32, #tpu.memory_space<vmem>>, %arg7: memref<1x128xf32, #tpu.memory_space<vmem>>, %arg8: memref<1x8x128xf32, #tpu.memory_space<vmem>>, %arg9: memref<8x128xf32, #tpu.memory_space<vmem>>) attributes {dimension_semantics = [#tpu.dimension_semantics<parallel>, #tpu.dimension_semantics<arbitrary>], iteration_bounds = array<i64: 2, 6>, scalar_prefetch = 0 : i64, scratch_operands = 1 : i64, tpu.core_type = #tpu.core_type<tc>, window_params = [{transform_indices = @transform_0, window_bounds = array<i64: 1, 8, 128>}, {transform_indices = @transform_1, window_bounds = array<i64: 1, 128, 8>}, {transform_indices = @transform_2, window_bounds = array<i64: 1, 128, 8>}, {transform_indices = @transform_3, window_bounds = array<i64: 1, 128, 8>}, {transform_indices = @transform_4, window_bounds = array<i64: 1, 8, 128>}, {pipeline_mode = #tpu.pipeline_mode<synchronous>, transform_indices = @transform_5, window_bounds = array<i64: 1, 128>}, {transform_indices = @transform_6, window_bounds = array<i64: 1, 8, 128>}]} {
    %c0 = arith.constant 0 : index
    %c0_0 = arith.constant 0 : index
    %c0_1 = arith.constant 0 : index
    %0 = vector.load %arg2[%c0, %c0_0, %c0_1] : memref<1x8x128xf32, #tpu.memory_space<vmem>>, vector<1x8x128xf32>
    %1 = vector.shape_cast %0 : vector<1x8x128xf32> to vector<8x128xf32>
    %c0_2 = arith.constant 0 : index
    %c0_3 = arith.constant 0 : index
    %c0_4 = arith.constant 0 : index
    %2 = vector.load %arg3[%c0_2, %c0_3, %c0_4] : memref<1x128x8xf32, #tpu.memory_space<vmem>>, vector<1x128x8xf32>
    %3 = vector.shape_cast %2 : vector<1x128x8xf32> to vector<128x8xf32>
    %cst = arith.constant dense<0.000000e+00> : vector<8x8xf32>
    %4 = tpu.matmul %1, %3, %cst {dimension_numbers = #tpu.dot_dimension_numbers<[1], [0], [0], [1], [0, 0, 1, 1], [], []>} : vector<8x128xf32>, vector<128x8xf32>, vector<8x8xf32> -> vector<8x8xf32>
    %c0_5 = arith.constant 0 : index
    %c0_6 = arith.constant 0 : index
    %c0_7 = arith.constant 0 : index
    %5 = vector.load %arg4[%c0_5, %c0_6, %c0_7] : memref<1x128x8xf32, #tpu.memory_space<vmem>>, vector<1x128x8xf32>
    %6 = vector.shape_cast %5 : vector<1x128x8xf32> to vector<128x8xf32>
    %cst_8 = arith.constant dense<0.000000e+00> : vector<8x8xf32>
    %7 = tpu.matmul %1, %6, %cst_8 {dimension_numbers = #tpu.dot_dimension_numbers<[1], [0], [0], [1], [0, 0, 1, 1], [], []>} : vector<8x128xf32>, vector<128x8xf32>, vector<8x8xf32> -> vector<8x8xf32>
    %c0_9 = arith.constant 0 : index
    %c0_10 = arith.constant 0 : index
    %c0_11 = arith.constant 0 : index
    %8 = vector.load %arg5[%c0_9, %c0_10, %c0_11] : memref<1x128x8xf32, #tpu.memory_space<vmem>>, vector<1x128x8xf32>
    %9 = vector.shape_cast %8 : vector<1x128x8xf32> to vector<128x8xf32>
    %cst_12 = arith.constant dense<0.000000e+00> : vector<8x8xf32>
    %10 = tpu.matmul %1, %9, %cst_12 {dimension_numbers = #tpu.dot_dimension_numbers<[1], [0], [0], [1], [0, 0, 1, 1], [], []>} : vector<8x128xf32>, vector<128x8xf32>, vector<8x8xf32> -> vector<8x8xf32>
    %cst_13 = arith.constant dense<0.000000e+00> : vector<8x8xf32>
    %11 = tpu.matmul %4, %7, %cst_13 {dimension_numbers = #tpu.dot_dimension_numbers<[1], [1], [0], [0], [0, 0, 1, 0], [], []>} : vector<8x8xf32>, vector<8x8xf32>, vector<8x8xf32> -> vector<8x8xf32>
    %cst_14 = arith.constant dense<0xFF800000> : vector<8xf32>
    %12 = vector.multi_reduction <maximumf>, %11, %cst_14 [1] : vector<8x8xf32> to vector<8xf32>
    %13 = vector.shape_cast %12 : vector<8xf32> to vector<8x1xf32>
    %14 = vector.broadcast %13 : vector<8x1xf32> to vector<8x8xf32>
    %15 = arith.subf %11, %14 : vector<8x8xf32>
    %16 = math.exp %15 : vector<8x8xf32>
    %cst_15 = arith.constant dense<0.000000e+00> : vector<8xf32>
    %17 = vector.multi_reduction <add>, %16, %cst_15 [1] : vector<8x8xf32> to vector<8xf32>
    %18 = vector.shape_cast %17 : vector<8xf32> to vector<8x1xf32>
    %19 = tpu.reciprocal %18 {approx = true} : vector<8x1xf32> -> vector<8x1xf32>
    %20 = vector.broadcast %19 : vector<8x1xf32> to vector<8x8xf32>
    %21 = arith.mulf %16, %20 : vector<8x8xf32>
    %cst_16 = arith.constant dense<0.000000e+00> : vector<8x8xf32>
    %22 = tpu.matmul %21, %10, %cst_16 {dimension_numbers = #tpu.dot_dimension_numbers<[1], [0], [0], [1], [0, 0, 1, 1], [], []>} : vector<8x8xf32>, vector<8x8xf32>, vector<8x8xf32> -> vector<8x8xf32>
    %c0_17 = arith.constant 0 : index
    %c0_18 = arith.constant 0 : index
    %c0_19 = arith.constant 0 : index
    %23 = vector.load %arg6[%c0_17, %c0_18, %c0_19] : memref<1x8x128xf32, #tpu.memory_space<vmem>>, vector<1x8x128xf32>
    %24 = vector.shape_cast %23 : vector<1x8x128xf32> to vector<8x128xf32>
    %cst_20 = arith.constant dense<0.000000e+00> : vector<8x128xf32>
    %25 = tpu.matmul %22, %24, %cst_20 {dimension_numbers = #tpu.dot_dimension_numbers<[1], [0], [0], [1], [0, 0, 1, 1], [], []>} : vector<8x8xf32>, vector<8x128xf32>, vector<8x128xf32> -> vector<8x128xf32>
    %c0_i32 = arith.constant 0 : i32
    %26 = arith.cmpi eq, %arg1, %c0_i32 : i32
    %27 = arith.extui %26 : i1 to i32
    %c0_i32_21 = arith.constant 0 : i32
    %28 = arith.cmpi ne, %27, %c0_i32_21 : i32
    scf.if %28 {
      %cst_27 = arith.constant 0.000000e+00 : f32
      %35 = vector.broadcast %cst_27 : f32 to vector<8x128xf32>
      %c0_28 = arith.constant 0 : index
      %c0_29 = arith.constant 0 : index
      %36 = vector.load %arg9[%c0_28, %c0_29] : memref<8x128xf32, #tpu.memory_space<vmem>>, vector<8x128xf32>
      tpu.vector_store %arg9[%c0_28, %c0_29], %35 {strides = array<i32>} : memref<8x128xf32, #tpu.memory_space<vmem>>, vector<8x128xf32>,
    } else {
    }
    %c0_22 = arith.constant 0 : index
    %c0_23 = arith.constant 0 : index
    %29 = vector.load %arg9[%c0_22, %c0_23] : memref<8x128xf32, #tpu.memory_space<vmem>>, vector<8x128xf32>
    %30 = arith.addf %29, %25 : vector<8x128xf32>
    %c0_24 = arith.constant 0 : index
    %c0_25 = arith.constant 0 : index
    %31 = vector.load %arg9[%c0_24, %c0_25] : memref<8x128xf32, #tpu.memory_space<vmem>>, vector<8x128xf32>
    tpu.vector_store %arg9[%c0_24, %c0_25], %30 {strides = array<i32>} : memref<8x128xf32, #tpu.memory_space<vmem>>, vector<8x128xf32>,
    %c5_i32 = arith.constant 5 : i32
    %32 = arith.cmpi eq, %arg1, %c5_i32 : i32
    %33 = arith.extui %32 : i1 to i32
    %c0_i32_26 = arith.constant 0 : i32
    %34 = arith.cmpi ne, %33, %c0_i32_26 : i32
    scf.if %34 {
      %c0_27 = arith.constant 0 : index
      %c0_28 = arith.constant 0 : index
      %35 = vector.load %arg9[%c0_27, %c0_28] : memref<8x128xf32, #tpu.memory_space<vmem>>, vector<8x128xf32>
      %c0_29 = arith.constant 0 : index
      %c0_30 = arith.constant 0 : index
      %36 = vector.load %arg7[%c0_29, %c0_30] : memref<1x128xf32, #tpu.memory_space<vmem>>, vector<1x128xf32>
      %37 = vector.broadcast %36 : vector<1x128xf32> to vector<8x128xf32>
      %38 = arith.addf %35, %37 : vector<8x128xf32>
      %c0_31 = arith.constant 0 : index
      %c0_32 = arith.constant 0 : index
      %c0_33 = arith.constant 0 : index
      %39 = vector.load %arg8[%c0_31, %c0_32, %c0_33] : memref<1x8x128xf32, #tpu.memory_space<vmem>>, vector<1x8x128xf32>
      %40 = vector.shape_cast %39 : vector<1x8x128xf32> to vector<8x128xf32>
      %41 = vector.shape_cast %38 : vector<8x128xf32> to vector<1x8x128xf32>
      tpu.vector_store %arg8[%c0_31, %c0_32, %c0_33], %41 {strides = array<i32>} : memref<1x8x128xf32, #tpu.memory_space<vmem>>, vector<1x8x128xf32>,
    } else {
    }
    return
  }
  func.func @transform_0(%arg0: i32, %arg1: i32) -> (i32, i32, i32) {
    %c0_i32 = arith.constant 0 : i32
    %c0_i32_0 = arith.constant 0 : i32
    %c0_i32_1 = arith.constant 0 : i32
    return %arg0, %c0_i32, %c0_i32_0 : i32, i32, i32
  }
  func.func @transform_1(%arg0: i32, %arg1: i32) -> (i32, i32, i32) {
    %c0_i32 = arith.constant 0 : i32
    %c0_i32_0 = arith.constant 0 : i32
    %c0_i32_1 = arith.constant 0 : i32
    return %arg1, %c0_i32, %c0_i32_0 : i32, i32, i32
  }
  func.func @transform_2(%arg0: i32, %arg1: i32) -> (i32, i32, i32) {
    %c0_i32 = arith.constant 0 : i32
    %c0_i32_0 = arith.constant 0 : i32
    %c0_i32_1 = arith.constant 0 : i32
    return %arg1, %c0_i32, %c0_i32_0 : i32, i32, i32
  }
  func.func @transform_3(%arg0: i32, %arg1: i32) -> (i32, i32, i32) {
    %c0_i32 = arith.constant 0 : i32
    %c0_i32_0 = arith.constant 0 : i32
    %c0_i32_1 = arith.constant 0 : i32
    return %arg1, %c0_i32, %c0_i32_0 : i32, i32, i32
  }
  func.func @transform_4(%arg0: i32, %arg1: i32) -> (i32, i32, i32) {
    %c0_i32 = arith.constant 0 : i32
    %c0_i32_0 = arith.constant 0 : i32
    %c0_i32_1 = arith.constant 0 : i32
    return %arg1, %c0_i32, %c0_i32_0 : i32, i32, i32
  }
  func.func @transform_5(%arg0: i32, %arg1: i32) -> (i32, i32) {
    %c0_i32 = arith.constant 0 : i32
    %c0_i32_0 = arith.constant 0 : i32
    %c0_i32_1 = arith.constant 0 : i32
    return %c0_i32, %c0_i32_0 : i32, i32
  }
  func.func @transform_6(%arg0: i32, %arg1: i32) -> (i32, i32, i32) {
    %c0_i32 = arith.constant 0 : i32
    %c0_i32_0 = arith.constant 0 : i32
    %c0_i32_1 = arith.constant 0 : i32
    return %arg0, %c0_i32, %c0_i32_0 : i32, i32, i32
  }
}

</mosaic_0001>

<llo_original>
// kernel: tpu_custom_call.1
$region0: #{tpu_custom_call.1}
  #allocation0 [shape = 'u32[]', space=smem, size = 0x4, offset = 0x4, fixed_abs, tag = 'smem constant byte address 0x4 - core index']
  #allocation1 [shape = 'u32[144,128]{1,0:T(1,128)}', space=vmem, size = 0x12000, scoped, tag = 'internal scratch']
  #allocation2 [shape = 'f32[8,128]{1,0:T(8,128)}', space=vmem, size = 0x1000, scoped, tag = 'scratch operand']
  %s0 = inlined_call_operand.vmem [shape: f32[2,8,128], index: 0, kind: input, shape index: {}]
  %s1 = inlined_call_operand.vmem [shape: f32[6,128,8], index: 1, kind: input, shape index: {}]
  %s2 = inlined_call_operand.vmem [shape: f32[6,128,8], index: 2, kind: input, shape index: {}]
  %s3 = inlined_call_operand.vmem [shape: f32[6,128,8], index: 3, kind: input, shape index: {}]
  %s4 = inlined_call_operand.vmem [shape: f32[6,8,128], index: 4, kind: input, shape index: {}]
  %s5 = inlined_call_operand.vmem [shape: f32[1,128], index: 5, kind: input, shape index: {}]
  %s6 = inlined_call_operand.hbm [shape: f32[2,8,128], index: 6, kind: output, shape index: {}]
  %s7 = sld [smem:[#allocation0]]
  $region65: #{tpu_custom_call.1} parent=0
    _
  %s9 = ssub.s32 1, %s7
  %s10 = scalar_select 0, %s9, %s7
  $region1: #{tpu_custom_call.1} parent=0
    #allocation3 [shape = 'u8[8192]{0}', space=vmem, size = 0x2000, scoped, tag = 'output window, operand 0']
    #allocation4 [shape = 's32[2]{0}', space=sflag, size = 0x8, scoped, tag = 'scoped memory for tpu_custom_call.1']
    %11 = vsyncpa [#allocation4], 0
    %s12 = scalar_lea.sflag [#allocation4], 1
    %13 = vsyncpa %s12, 0
    loop: start=0, step=1, limit=14
    $region2: #{tpu_custom_call.1} parent=1 // loop_pre_header
      _
    $region3: #{tpu_custom_call.1} parent=1 // loop_header
      %s15 = sphi 0, %s19
      %p16 = scmp.ge.s32.totalorder %s15, 14
      %s22 = sphi 0, %s34
      %s23 = sphi 0, %s30
      %s24 = sphi 0, %s22
      %s25 = sphi 0, %s23
      %s26 = sphi 0, %s24
      %s27 = sphi 0, %s25
      %s37 = sphi 0, %s39
      %s40 = sphi 0, %s37
      %s41 = sphi 0, %s40
      %s57 = sphi 0, %s41
      %s63 = sphi 0, %s65
      %s66 = sphi 0, %s63
      %s67 = sphi 0, %s66
      %s83 = sphi 0, %s67
      %s89 = sphi 0, %s91
      %s92 = sphi 0, %s89
      %s93 = sphi 0, %s92
      %s109 = sphi 0, %s93
      %s115 = sphi 0, %s117
      %s118 = sphi 0, %s115
      %s119 = sphi 0, %s118
      %s135 = sphi 0, %s119
      %s141 = sphi 0, %s143
      %s144 = sphi 0, %s141
      %s145 = sphi 0, %s144
      %s161 = sphi 0, %s145
      %s165 = sphi 0, %s165
      %s167 = sphi 0, %s165
      %s168 = sphi 0, %s167
      %s182 = sphi 0, %s168
      %s188 = sphi 0, %s190
      %s191 = sphi 0, %s188
      %s192 = sphi 0, %s191
      %s208 = sphi 0, %s192
    $region4: #{tpu_custom_call.1} parent=1 // loop_header_branch
      %18 = sbr.rel (%p16) target = $region8
    $region5: #{tpu_custom_call.1} parent=1 // loop_body
      %s20 = ssub.s32 %s15, 1
      %s21 = ssub.s32 %s15, 2
      %s28 = sadd.s32 1, %s23
      %p29 = scmp.ge.s32.totalorder %s28, 6
      %s30 = scalar_select %p29, 0, %s28
      %s31 = sadd.s32 1, %s22
      %s32 = scalar_select %p29, %s31, %s22
      %p33 = scmp.ge.s32.totalorder %s32, 2
      %s34 = scalar_select %p33, 0, %s32
      %s35 = ssub.s32 %s22, %s34
      %p36 = scmp.eq.s32.totalorder %s35, 0
      %s38 = sadd.s32 %s37, 1
      %s39 = scalar_select %p36, %s37, %s38
      %p42 = pneg %p36
      %p43 = scmp.eq.s32.totalorder %s15, 11
      %p44 = por %p42, %p43
      %p45 = scmp.ne.s32.totalorder %s37, %s40
      %p46 = scmp.eq.s32.totalorder %s15, 0
      %p47 = por %p45, %p46
      %p48 = scmp.ne.s32.totalorder %s37, %s40
      %p49 = scmp.eq.s32.totalorder %s20, 11
      %p50 = por %p48, %p49
      %p51 = scmp.ne.s32.totalorder %s40, %s41
      %p52 = scmp.eq.s32.totalorder %s20, 0
      %p53 = por %p51, %p52
      %p54 = scmp.ne.s32.totalorder %s40, %s41
      %p55 = scmp.eq.s32.totalorder %s21, 11
      %p56 = por %p54, %p55
      %p58 = scmp.ne.s32.totalorder %s41, %s57
      %p59 = scmp.eq.s32.totalorder %s21, 0
      %p60 = por %p58, %p59
      %s61 = ssub.s32 %s23, %s30
      %p62 = scmp.eq.s32.totalorder %s61, 0
      %s64 = sadd.s32 %s63, 1
      %s65 = scalar_select %p62, %s63, %s64
      %p68 = pneg %p62
      %p69 = scmp.eq.s32.totalorder %s15, 11
      %p70 = por %p68, %p69
      %p71 = scmp.ne.s32.totalorder %s63, %s66
      %p72 = scmp.eq.s32.totalorder %s15, 0
      %p73 = por %p71, %p72
      %p74 = scmp.ne.s32.totalorder %s63, %s66
      %p75 = scmp.eq.s32.totalorder %s20, 11
      %p76 = por %p74, %p75
      %p77 = scmp.ne.s32.totalorder %s66, %s67
      %p78 = scmp.eq.s32.totalorder %s20, 0
      %p79 = por %p77, %p78
      %p80 = scmp.ne.s32.totalorder %s66, %s67
      %p81 = scmp.eq.s32.totalorder %s21, 11
      %p82 = por %p80, %p81
      %p84 = scmp.ne.s32.totalorder %s67, %s83
      %p85 = scmp.eq.s32.totalorder %s21, 0
      %p86 = por %p84, %p85
      %s87 = ssub.s32 %s23, %s30
      %p88 = scmp.eq.s32.totalorder %s87, 0
      %s90 = sadd.s32 %s89, 1
      %s91 = scalar_select %p88, %s89, %s90
      %p94 = pneg %p88
      %p95 = scmp.eq.s32.totalorder %s15, 11
      %p96 = por %p94, %p95
      %p97 = scmp.ne.s32.totalorder %s89, %s92
      %p98 = scmp.eq.s32.totalorder %s15, 0
      %p99 = por %p97, %p98
      %p100 = scmp.ne.s32.totalorder %s89, %s92
      %p101 = scmp.eq.s32.totalorder %s20, 11
      %p102 = por %p100, %p101
      %p103 = scmp.ne.s32.totalorder %s92, %s93
      %p104 = scmp.eq.s32.totalorder %s20, 0
      %p105 = por %p103, %p104
      %p106 = scmp.ne.s32.totalorder %s92, %s93
      %p107 = scmp.eq.s32.totalorder %s21, 11
      %p108 = por %p106, %p107
      %p110 = scmp.ne.s32.totalorder %s93, %s109
      %p111 = scmp.eq.s32.totalorder %s21, 0
      %p112 = por %p110, %p111
      %s113 = ssub.s32 %s23, %s30
      %p114 = scmp.eq.s32.totalorder %s113, 0
      %s116 = sadd.s32 %s115, 1
      %s117 = scalar_select %p114, %s115, %s116
      %p120 = pneg %p114
      %p121 = scmp.eq.s32.totalorder %s15, 11
      %p122 = por %p120, %p121
      %p123 = scmp.ne.s32.totalorder %s115, %s118
      %p124 = scmp.eq.s32.totalorder %s15, 0
      %p125 = por %p123, %p124
      %p126 = scmp.ne.s32.totalorder %s115, %s118
      %p127 = scmp.eq.s32.totalorder %s20, 11
      %p128 = por %p126, %p127
      %p129 = scmp.ne.s32.totalorder %s118, %s119
      %p130 = scmp.eq.s32.totalorder %s20, 0
      %p131 = por %p129, %p130
      %p132 = scmp.ne.s32.totalorder %s118, %s119
      %p133 = scmp.eq.s32.totalorder %s21, 11
      %p134 = por %p132, %p133
      %p136 = scmp.ne.s32.totalorder %s119, %s135
      %p137 = scmp.eq.s32.totalorder %s21, 0
      %p138 = por %p136, %p137
      %s139 = ssub.s32 %s23, %s30
      %p140 = scmp.eq.s32.totalorder %s139, 0
      %s142 = sadd.s32 %s141, 1
      %s143 = scalar_select %p140, %s141, %s142
      %p146 = pneg %p140
      %p147 = scmp.eq.s32.totalorder %s15, 11
      %p148 = por %p146, %p147
      %p149 = scmp.ne.s32.totalorder %s141, %s144
      %p150 = scmp.eq.s32.totalorder %s15, 0
      %p151 = por %p149, %p150
      %p152 = scmp.ne.s32.totalorder %s141, %s144
      %p153 = scmp.eq.s32.totalorder %s20, 11
      %p154 = por %p152, %p153
      %p155 = scmp.ne.s32.totalorder %s144, %s145
      %p156 = scmp.eq.s32.totalorder %s20, 0
      %p157 = por %p155, %p156
      %p158 = scmp.ne.s32.totalorder %s144, %s145
      %p159 = scmp.eq.s32.totalorder %s21, 11
      %p160 = por %p158, %p159
      %p162 = scmp.ne.s32.totalorder %s145, %s161
      %p163 = scmp.eq.s32.totalorder %s21, 0
      %p164 = por %p162, %p163
      %s166 = sadd.s32 %s165, 1
      %p169 = scmp.eq.s32.totalorder %s15, 11
      %p170 = scmp.ne.s32.totalorder %s165, %s167
      %p171 = scmp.eq.s32.totalorder %s15, 0
      %p172 = por %p170, %p171
      %p173 = scmp.ne.s32.totalorder %s165, %s167
      %p174 = scmp.eq.s32.totalorder %s20, 11
      %p175 = por %p173, %p174
      %p176 = scmp.ne.s32.totalorder %s167, %s168
      %p177 = scmp.eq.s32.totalorder %s20, 0
      %p178 = por %p176, %p177
      %p179 = scmp.ne.s32.totalorder %s167, %s168
      %p180 = scmp.eq.s32.totalorder %s21, 11
      %p181 = por %p179, %p180
      %p183 = scmp.ne.s32.totalorder %s168, %s182
      %p184 = scmp.eq.s32.totalorder %s21, 0
      %p185 = por %p183, %p184
      %s186 = ssub.s32 %s22, %s34
      %p187 = scmp.eq.s32.totalorder %s186, 0
      %s189 = sadd.s32 %s188, 1
      %s190 = scalar_select %p187, %s188, %s189
      %p193 = pneg %p187
      %p194 = scmp.eq.s32.totalorder %s15, 11
      %p195 = por %p193, %p194
      %p196 = scmp.ne.s32.totalorder %s188, %s191
      %p197 = scmp.eq.s32.totalorder %s15, 0
      %p198 = por %p196, %p197
      %p199 = scmp.ne.s32.totalorder %s188, %s191
      %p200 = scmp.eq.s32.totalorder %s20, 11
      %p201 = por %p199, %p200
      %p202 = scmp.ne.s32.totalorder %s191, %s192
      %p203 = scmp.eq.s32.totalorder %s20, 0
      %p204 = por %p202, %p203
      %p205 = scmp.ne.s32.totalorder %s191, %s192
      %p206 = scmp.eq.s32.totalorder %s21, 11
      %p207 = por %p205, %p206
      %p209 = scmp.ne.s32.totalorder %s192, %s208
      %p210 = scmp.eq.s32.totalorder %s21, 0
      %p211 = por %p209, %p210
      %p212 = scmp.le.s32.totalorder 1, %s15
      %p213 = scmp.lt.s32.totalorder %s15, 13
      %p214 = pnand %p212, %p213
      %p215 = pneg %p214
      // Predicated region
      $region9: #{tpu_custom_call.1} parent=5 // pred_check
        _
      $region10: #{tpu_custom_call.1} parent=5 // pred_check_branch
        %217 = sbr.rel (%p214) target = $region12
      $region11: #{tpu_custom_call.1} parent=5 // pred_region
        %s218 = ssub.s32 %s15, 1
        // Predicated region
        $region13: #{tpu_custom_call.1} parent=11 // pred_check
          %p219 = pneg %p178
        $region14: #{tpu_custom_call.1} parent=11 // pred_check_branch
          %221 = sbr.rel (%p219) target = $region16
        $region15: #{tpu_custom_call.1} parent=11 // pred_region
          _
        $region16: #{tpu_custom_call.1} parent=11 // pred_fallthru
          _
      $region12: #{tpu_custom_call.1} parent=5 // pred_fallthru
        _
      %p222 = scmp.lt.s32.totalorder %s15, 12
      // Predicated region
      $region17: #{tpu_custom_call.1} parent=5 // pred_check
        %p223 = pneg %p222
      $region18: #{tpu_custom_call.1} parent=5 // pred_check_branch
        %225 = sbr.rel (%p223) target = $region20
      $region19: #{tpu_custom_call.1} parent=5 // pred_region
        // Predicated region
        $region21: #{tpu_custom_call.1} parent=19 // pred_check
          %p226 = pneg %p47
        $region22: #{tpu_custom_call.1} parent=19 // pred_check_branch
          %228 = sbr.rel (%p226) target = $region24
        $region23: #{tpu_custom_call.1} parent=19 // pred_region
          %p229 = scmp.lt.s32.totalorder %s22, 1
          %s230 = scalar_select %p229, %s22, 1
          %s231 = smul.addr %s230, 8
          %s232 = scalar_lea.vmem %s0, %s231
        $region24: #{tpu_custom_call.1} parent=19 // pred_fallthru
          _
        // Predicated region
        $region25: #{tpu_custom_call.1} parent=19 // pred_check
          %p233 = pneg %p73
        $region26: #{tpu_custom_call.1} parent=19 // pred_check_branch
          %235 = sbr.rel (%p233) target = $region28
        $region27: #{tpu_custom_call.1} parent=19 // pred_region
          %p236 = scmp.lt.s32.totalorder %s23, 5
          %s237 = scalar_select %p236, %s23, 5
          %s238 = smul.addr %s237, 16
          %s239 = smul.addr %s238, 8
          %s240 = scalar_lea.vmem %s1, %s239
        $region28: #{tpu_custom_call.1} parent=19 // pred_fallthru
          _
        // Predicated region
        $region29: #{tpu_custom_call.1} parent=19 // pred_check
          %p241 = pneg %p99
        $region30: #{tpu_custom_call.1} parent=19 // pred_check_branch
          %243 = sbr.rel (%p241) target = $region32
        $region31: #{tpu_custom_call.1} parent=19 // pred_region
          %p244 = scmp.lt.s32.totalorder %s23, 5
          %s245 = scalar_select %p244, %s23, 5
          %s246 = smul.addr %s245, 16
          %s247 = smul.addr %s246, 8
          %s248 = scalar_lea.vmem %s2, %s247
        $region32: #{tpu_custom_call.1} parent=19 // pred_fallthru
          _
        // Predicated region
        $region33: #{tpu_custom_call.1} parent=19 // pred_check
          %p249 = pneg %p125
        $region34: #{tpu_custom_call.1} parent=19 // pred_check_branch
          %251 = sbr.rel (%p249) target = $region36
        $region35: #{tpu_custom_call.1} parent=19 // pred_region
          %p252 = scmp.lt.s32.totalorder %s23, 5
          %s253 = scalar_select %p252, %s23, 5
          %s254 = smul.addr %s253, 16
          %s255 = smul.addr %s254, 8
          %s256 = scalar_lea.vmem %s3, %s255
        $region36: #{tpu_custom_call.1} parent=19 // pred_fallthru
          _
        // Predicated region
        $region37: #{tpu_custom_call.1} parent=19 // pred_check
          %p257 = pneg %p151
        $region38: #{tpu_custom_call.1} parent=19 // pred_check_branch
          %259 = sbr.rel (%p257) target = $region40
        $region39: #{tpu_custom_call.1} parent=19 // pred_region
          %p260 = scmp.lt.s32.totalorder %s23, 5
          %s261 = scalar_select %p260, %s23, 5
          %s262 = smul.addr %s261, 8
          %s263 = scalar_lea.vmem %s4, %s262
        $region40: #{tpu_custom_call.1} parent=19 // pred_fallthru
          _
      $region20: #{tpu_custom_call.1} parent=5 // pred_fallthru
        _
      %p264 = scmp.le.s32.totalorder 1, %s15
      %p265 = scmp.lt.s32.totalorder %s15, 13
      %p266 = pnand %p264, %p265
      %p267 = pneg %p266
      // Predicated region
      $region41: #{tpu_custom_call.1} parent=5 // pred_check
        _
      $region42: #{tpu_custom_call.1} parent=5 // pred_check_branch
        %269 = sbr.rel (%p266) target = $region44
      $region43: #{tpu_custom_call.1} parent=5 // pred_region
        %s270 = ssub.s32 %s15, 1
        %p271 = scmp.lt.s32.totalorder %s24, 1
        %s272 = scalar_select %p271, %s24, 1
        %s273 = smul.addr %s272, 8
        %s274 = scalar_lea.vmem %s0, %s273
        %p275 = pneg %p53
        %p276 = pneg %p50
        %p277 = scmp.lt.s32.totalorder %s25, 5
        %s278 = scalar_select %p277, %s25, 5
        %s279 = smul.addr %s278, 16
        %s280 = smul.addr %s279, 8
        %s281 = scalar_lea.vmem %s1, %s280
        %p282 = pneg %p79
        %p283 = pneg %p76
        %p284 = scmp.lt.s32.totalorder %s25, 5
        %s285 = scalar_select %p284, %s25, 5
        %s286 = smul.addr %s285, 16
        %s287 = smul.addr %s286, 8
        %s288 = scalar_lea.vmem %s2, %s287
        %p289 = pneg %p105
        %p290 = pneg %p102
        %p291 = scmp.lt.s32.totalorder %s25, 5
        %s292 = scalar_select %p291, %s25, 5
        %s293 = smul.addr %s292, 16
        %s294 = smul.addr %s293, 8
        %s295 = scalar_lea.vmem %s3, %s294
        %p296 = pneg %p131
        %p297 = pneg %p128
        %p298 = scmp.lt.s32.totalorder %s25, 5
        %s299 = scalar_select %p298, %s25, 5
        %s300 = smul.addr %s299, 8
        %s301 = scalar_lea.vmem %s4, %s300
        %p302 = pneg %p157
        %p303 = pneg %p154
        %p304 = pneg %p178
        %p305 = pneg %p175
        %p306 = pneg %p204
        %p307 = pneg %p201
        %s308 = sand.u32 %s191, 1
        %s309 = scalar_lea.sflag [#allocation4], %s308
        %s310 = sand.u32 %s191, 1
        %s311 = smul.addr %s310, 8
        %s312 = scalar_lea.vmem [#allocation3], %s311
        %p313 = scmp.lt.s32.totalorder %s24, 1
        %s314 = scalar_select %p313, %s24, 1
        %s315 = smul.addr %s314, 8
        %s316 = scalar_lea.vmem %s0, %s315
        %p317 = scmp.lt.s32.totalorder %s25, 5
        %s318 = scalar_select %p317, %s25, 5
        %s319 = smul.addr %s318, 16
        %s320 = smul.addr %s319, 8
        %s321 = scalar_lea.vmem %s1, %s320
        %p322 = scmp.lt.s32.totalorder %s25, 5
        %s323 = scalar_select %p322, %s25, 5
        %s324 = smul.addr %s323, 16
        %s325 = smul.addr %s324, 8
        %s326 = scalar_lea.vmem %s2, %s325
        %p327 = scmp.lt.s32.totalorder %s25, 5
        %s328 = scalar_select %p327, %s25, 5
        %s329 = smul.addr %s328, 16
        %s330 = smul.addr %s329, 8
        %s331 = scalar_lea.vmem %s3, %s330
        %p332 = scmp.lt.s32.totalorder %s25, 5
        %s333 = scalar_select %p332, %s25, 5
        %s334 = smul.addr %s333, 8
        %s335 = scalar_lea.vmem %s4, %s334
        %v336 = vld [vmem:[%s316] sm:$0xff]
        %v337 = vld [vmem:[%s321] sm:$0xff]
        %v338 = vld [vmem:[%s321 + $0x8] sm:$0xff]
        %v339 = vld [vmem:[%s321 + $0x10] sm:$0xff]
        %v340 = vld [vmem:[%s321 + $0x18] sm:$0xff]
        %v341 = vld [vmem:[%s321 + $0x20] sm:$0xff]
        %v342 = vld [vmem:[%s321 + $0x28] sm:$0xff]
        %v343 = vld [vmem:[%s321 + $0x30] sm:$0xff]
        %v344 = vld [vmem:[%s321 + $0x38] sm:$0xff]
        %v345 = vld [vmem:[%s321 + $0x40] sm:$0xff]
        %v346 = vld [vmem:[%s321 + $0x48] sm:$0xff]
        %v347 = vld [vmem:[%s321 + $0x50] sm:$0xff]
        %v348 = vld [vmem:[%s321 + $0x58] sm:$0xff]
        %v349 = vld [vmem:[%s321 + $0x60] sm:$0xff]
        %v350 = vld [vmem:[%s321 + $0x68] sm:$0xff]
        %v351 = vld [vmem:[%s321 + $0x70] sm:$0xff]
        %v352 = vld [vmem:[%s321 + $0x78] sm:$0xff]
        %353 = vmatprep.subr.mxu0 0.0
        %354 = vmatpush1.msra.mxu0 %v337
        %355 = vmatprep.subr.mxu0 0.0
        %356 = vmatpush1.msra.mxu0 %v338
        %357 = vmatprep.subr.mxu0 0.0
        %358 = vmatpush1.msra.mxu0 %v339
        %359 = vmatprep.subr.mxu0 0.0
        %360 = vmatpush1.msra.mxu0 %v340
        %361 = vmatprep.subr.mxu0 0.0
        %362 = vmatpush1.msra.mxu0 %v341
        %363 = vmatprep.subr.mxu0 0.0
        %364 = vmatpush1.msra.mxu0 %v342
        %365 = vmatprep.subr.mxu0 0.0
        %366 = vmatpush1.msra.mxu0 %v343
        %367 = vmatprep.subr.mxu0 0.0
        %368 = vmatpush1.msra.mxu0 %v344
        %369 = vmatprep.subr.mxu0 0.0
        %370 = vmatpush1.msra.mxu0 %v345
        %371 = vmatprep.subr.mxu0 0.0
        %372 = vmatpush1.msra.mxu0 %v346
        %373 = vmatprep.subr.mxu0 0.0
        %374 = vmatpush1.msra.mxu0 %v347
        %375 = vmatprep.subr.mxu0 0.0
        %376 = vmatpush1.msra.mxu0 %v348
        %377 = vmatprep.subr.mxu0 0.0
        %378 = vmatpush1.msra.mxu0 %v349
        %379 = vmatprep.subr.mxu0 0.0
        %380 = vmatpush1.msra.mxu0 %v350
        %381 = vmatprep.subr.mxu0 0.0
        %382 = vmatpush1.msra.mxu0 %v351
        %383 = vmatprep.subr.mxu0 0.0
        %384 = vmatpush1.msra.mxu0 %v352
        %385 = vmatprep.subr.mxu0 0.0
        %386 = vmatpush1.msra.mxu0 0.0
        %387 = vmatprep.subr.mxu0 0.0
        %388 = vmatpush1.msra.mxu0 0.0
        %389 = vmatprep.subr.mxu0 0.0
        %390 = vmatpush1.msra.mxu0 0.0
        %391 = vmatprep.subr.mxu0 0.0
        %392 = vmatpush1.msra.mxu0 0.0
        %393 = vmatprep.subr.mxu0 0.0
        %394 = vmatpush1.msra.mxu0 0.0
        %395 = vmatprep.subr.mxu0 0.0
        %396 = vmatpush1.msra.mxu0 0.0
        %397 = vmatprep.subr.mxu0 0.0
        %398 = vmatpush1.msra.mxu0 0.0
        %399 = vmatprep.subr.mxu0 0.0
        %400 = vmatpush1.msra.mxu0 0.0
        %401 = vmatprep.subr.mxu0 0.0
        %402 = vmatpush1.msra.mxu0 0.0
        %403 = vmatprep.subr.mxu0 0.0
        %404 = vmatpush1.msra.mxu0 0.0
        %405 = vmatprep.subr.mxu0 0.0
        %406 = vmatpush1.msra.mxu0 0.0
        %407 = vmatprep.subr.mxu0 0.0
        %408 = vmatpush1.msra.mxu0 0.0
        %409 = vmatprep.subr.mxu0 0.0
        %410 = vmatpush1.msra.mxu0 0.0
        %411 = vmatprep.subr.mxu0 0.0
        %412 = vmatpush1.msra.mxu0 0.0
        %413 = vmatprep.subr.mxu0 0.0
        %414 = vmatpush1.msra.mxu0 0.0
        %415 = vmatprep.subr.mxu0 0.0
        %416 = vmatpush1.msra.mxu0 0.0
        %417 = vmatprep.mubr.f32.mxu0 0.0
        %418 = vmatmul.mubr.f32.gmra.mrb[0].mxu0 %v336
        %v419 = vpop.f32.mrb[0].mxu0
        %v420 = vadd.f32 0.0, %v419
        %v421 = vpop.f32.mrb[0].mxu0
        %422 = vdwg.mxu0
        %v423 = vld [vmem:[%s326] sm:$0xff]
        %v424 = vld [vmem:[%s326 + $0x8] sm:$0xff]
        %v425 = vld [vmem:[%s326 + $0x10] sm:$0xff]
        %v426 = vld [vmem:[%s326 + $0x18] sm:$0xff]
        %v427 = vld [vmem:[%s326 + $0x20] sm:$0xff]
        %v428 = vld [vmem:[%s326 + $0x28] sm:$0xff]
        %v429 = vld [vmem:[%s326 + $0x30] sm:$0xff]
        %v430 = vld [vmem:[%s326 + $0x38] sm:$0xff]
        %v431 = vld [vmem:[%s326 + $0x40] sm:$0xff]
        %v432 = vld [vmem:[%s326 + $0x48] sm:$0xff]
        %v433 = vld [vmem:[%s326 + $0x50] sm:$0xff]
        %v434 = vld [vmem:[%s326 + $0x58] sm:$0xff]
        %v435 = vld [vmem:[%s326 + $0x60] sm:$0xff]
        %v436 = vld [vmem:[%s326 + $0x68] sm:$0xff]
        %v437 = vld [vmem:[%s326 + $0x70] sm:$0xff]
        %v438 = vld [vmem:[%s326 + $0x78] sm:$0xff]
        %439 = vmatprep.subr.mxu0 0.0
        %440 = vmatpush1.msra.mxu0 %v423
        %441 = vmatprep.subr.mxu0 0.0
        %442 = vmatpush1.msra.mxu0 %v424
        %443 = vmatprep.subr.mxu0 0.0
        %444 = vmatpush1.msra.mxu0 %v425
        %445 = vmatprep.subr.mxu0 0.0
        %446 = vmatpush1.msra.mxu0 %v426
        %447 = vmatprep.subr.mxu0 0.0
        %448 = vmatpush1.msra.mxu0 %v427
        %449 = vmatprep.subr.mxu0 0.0
        %450 = vmatpush1.msra.mxu0 %v428
        %451 = vmatprep.subr.mxu0 0.0
        %452 = vmatpush1.msra.mxu0 %v429
        %453 = vmatprep.subr.mxu0 0.0
        %454 = vmatpush1.msra.mxu0 %v430
        %455 = vmatprep.subr.mxu0 0.0
        %456 = vmatpush1.msra.mxu0 %v431
        %457 = vmatprep.subr.mxu0 0.0
        %458 = vmatpush1.msra.mxu0 %v432
        %459 = vmatprep.subr.mxu0 0.0
        %460 = vmatpush1.msra.mxu0 %v433
        %461 = vmatprep.subr.mxu0 0.0
        %462 = vmatpush1.msra.mxu0 %v434
        %463 = vmatprep.subr.mxu0 0.0
        %464 = vmatpush1.msra.mxu0 %v435
        %465 = vmatprep.subr.mxu0 0.0
        %466 = vmatpush1.msra.mxu0 %v436
        %467 = vmatprep.subr.mxu0 0.0
        %468 = vmatpush1.msra.mxu0 %v437
        %469 = vmatprep.subr.mxu0 0.0
        %470 = vmatpush1.msra.mxu0 %v438
        %471 = vmatprep.subr.mxu0 0.0
        %472 = vmatpush1.msra.mxu0 0.0
        %473 = vmatprep.subr.mxu0 0.0
        %474 = vmatpush1.msra.mxu0 0.0
        %475 = vmatprep.subr.mxu0 0.0
        %476 = vmatpush1.msra.mxu0 0.0
        %477 = vmatprep.subr.mxu0 0.0
        %478 = vmatpush1.msra.mxu0 0.0
        %479 = vmatprep.subr.mxu0 0.0
        %480 = vmatpush1.msra.mxu0 0.0
        %481 = vmatprep.subr.mxu0 0.0
        %482 = vmatpush1.msra.mxu0 0.0
        %483 = vmatprep.subr.mxu0 0.0
        %484 = vmatpush1.msra.mxu0 0.0
        %485 = vmatprep.subr.mxu0 0.0
        %486 = vmatpush1.msra.mxu0 0.0
        %487 = vmatprep.subr.mxu0 0.0
        %488 = vmatpush1.msra.mxu0 0.0
        %489 = vmatprep.subr.mxu0 0.0
        %490 = vmatpush1.msra.mxu0 0.0
        %491 = vmatprep.subr.mxu0 0.0
        %492 = vmatpush1.msra.mxu0 0.0
        %493 = vmatprep.subr.mxu0 0.0
        %494 = vmatpush1.msra.mxu0 0.0
        %495 = vmatprep.subr.mxu0 0.0
        %496 = vmatpush1.msra.mxu0 0.0
        %497 = vmatprep.subr.mxu0 0.0
        %498 = vmatpush1.msra.mxu0 0.0
        %499 = vmatprep.subr.mxu0 0.0
        %500 = vmatpush1.msra.mxu0 0.0
        %501 = vmatprep.subr.mxu0 0.0
        %502 = vmatpush1.msra.mxu0 0.0
        %503 = vmatprep.mubr.f32.mxu0 0.0
        %504 = vmatmul.mubr.f32.gmra.mrb[0].mxu0 %v336
        %v505 = vpop.f32.mrb[0].mxu0
        %v506 = vadd.f32 0.0, %v505
        %v507 = vpop.f32.mrb[0].mxu0
        %508 = vdwg.mxu0
        %v509 = vld [vmem:[%s331] sm:$0xff]
        %v510 = vld [vmem:[%s331 + $0x8] sm:$0xff]
        %v511 = vld [vmem:[%s331 + $0x10] sm:$0xff]
        %v512 = vld [vmem:[%s331 + $0x18] sm:$0xff]
        %v513 = vld [vmem:[%s331 + $0x20] sm:$0xff]
        %v514 = vld [vmem:[%s331 + $0x28] sm:$0xff]
        %v515 = vld [vmem:[%s331 + $0x30] sm:$0xff]
        %v516 = vld [vmem:[%s331 + $0x38] sm:$0xff]
        %v517 = vld [vmem:[%s331 + $0x40] sm:$0xff]
        %v518 = vld [vmem:[%s331 + $0x48] sm:$0xff]
        %v519 = vld [vmem:[%s331 + $0x50] sm:$0xff]
        %v520 = vld [vmem:[%s331 + $0x58] sm:$0xff]
        %v521 = vld [vmem:[%s331 + $0x60] sm:$0xff]
        %v522 = vld [vmem:[%s331 + $0x68] sm:$0xff]
        %v523 = vld [vmem:[%s331 + $0x70] sm:$0xff]
        %v524 = vld [vmem:[%s331 + $0x78] sm:$0xff]
        %525 = vmatprep.subr.mxu0 0.0
        %526 = vmatpush1.msra.mxu0 %v509
        %527 = vmatprep.subr.mxu0 0.0
        %528 = vmatpush1.msra.mxu0 %v510
        %529 = vmatprep.subr.mxu0 0.0
        %530 = vmatpush1.msra.mxu0 %v511
        %531 = vmatprep.subr.mxu0 0.0
        %532 = vmatpush1.msra.mxu0 %v512
        %533 = vmatprep.subr.mxu0 0.0
        %534 = vmatpush1.msra.mxu0 %v513
        %535 = vmatprep.subr.mxu0 0.0
        %536 = vmatpush1.msra.mxu0 %v514
        %537 = vmatprep.subr.mxu0 0.0
        %538 = vmatpush1.msra.mxu0 %v515
        %539 = vmatprep.subr.mxu0 0.0
        %540 = vmatpush1.msra.mxu0 %v516
        %541 = vmatprep.subr.mxu0 0.0
        %542 = vmatpush1.msra.mxu0 %v517
        %543 = vmatprep.subr.mxu0 0.0
        %544 = vmatpush1.msra.mxu0 %v518
        %545 = vmatprep.subr.mxu0 0.0
        %546 = vmatpush1.msra.mxu0 %v519
        %547 = vmatprep.subr.mxu0 0.0
        %548 = vmatpush1.msra.mxu0 %v520
        %549 = vmatprep.subr.mxu0 0.0
        %550 = vmatpush1.msra.mxu0 %v521
        %551 = vmatprep.subr.mxu0 0.0
        %552 = vmatpush1.msra.mxu0 %v522
        %553 = vmatprep.subr.mxu0 0.0
        %554 = vmatpush1.msra.mxu0 %v523
        %555 = vmatprep.subr.mxu0 0.0
        %556 = vmatpush1.msra.mxu0 %v524
        %557 = vmatprep.subr.mxu0 0.0
        %558 = vmatpush1.msra.mxu0 0.0
        %559 = vmatprep.subr.mxu0 0.0
        %560 = vmatpush1.msra.mxu0 0.0
        %561 = vmatprep.subr.mxu0 0.0
        %562 = vmatpush1.msra.mxu0 0.0
        %563 = vmatprep.subr.mxu0 0.0
        %564 = vmatpush1.msra.mxu0 0.0
        %565 = vmatprep.subr.mxu0 0.0
        %566 = vmatpush1.msra.mxu0 0.0
        %567 = vmatprep.subr.mxu0 0.0
        %568 = vmatpush1.msra.mxu0 0.0
        %569 = vmatprep.subr.mxu0 0.0
        %570 = vmatpush1.msra.mxu0 0.0
        %571 = vmatprep.subr.mxu0 0.0
        %572 = vmatpush1.msra.mxu0 0.0
        %573 = vmatprep.subr.mxu0 0.0
        %574 = vmatpush1.msra.mxu0 0.0
        %575 = vmatprep.subr.mxu0 0.0
        %576 = vmatpush1.msra.mxu0 0.0
        %577 = vmatprep.subr.mxu0 0.0
        %578 = vmatpush1.msra.mxu0 0.0
        %579 = vmatprep.subr.mxu0 0.0
        %580 = vmatpush1.msra.mxu0 0.0
        %581 = vmatprep.subr.mxu0 0.0
        %582 = vmatpush1.msra.mxu0 0.0
        %583 = vmatprep.subr.mxu0 0.0
        %584 = vmatpush1.msra.mxu0 0.0
        %585 = vmatprep.subr.mxu0 0.0
        %586 = vmatpush1.msra.mxu0 0.0
        %587 = vmatprep.subr.mxu0 0.0
        %588 = vmatpush1.msra.mxu0 0.0
        %589 = vmatprep.mubr.f32.mxu0 0.0
        %590 = vmatmul.mubr.f32.gmra.mrb[0].mxu0 %v336
        %v591 = vpop.f32.mrb[0].mxu0
        %v592 = vadd.f32 0.0, %v591
        %v593 = vpop.f32.mrb[0].mxu0
        %594 = vdwg.mxu0
        %vm595 = vcmask 64512
        %v597 = vsel %vm595, %v420, 0
        %v600 = vsel %vm595, %v506, 0
        %602 = vmatprep.subr.mxu0 0.0
        %603 = vmatpush1.xpose.msra.mxu0 %v600
        %604 = vmatprep.subr.mxu0 0.0
        %605 = vmatpush1.xpose.msra.mxu0 0.0
        %606 = vmatprep.subr.mxu0 0.0
        %607 = vmatpush1.xpose.msra.mxu0 0.0
        %608 = vmatprep.subr.mxu0 0.0
        %609 = vmatpush1.xpose.msra.mxu0 0.0
        %610 = vmatprep.subr.mxu0 0.0
        %611 = vmatpush1.xpose.msra.mxu0 0.0
        %612 = vmatprep.subr.mxu0 0.0
        %613 = vmatpush1.xpose.msra.mxu0 0.0
        %614 = vmatprep.subr.mxu0 0.0
        %615 = vmatpush1.xpose.msra.mxu0 0.0
        %616 = vmatprep.subr.mxu0 0.0
        %617 = vmatpush1.xpose.msra.mxu0 0.0
        %618 = vmatprep.subr.mxu0 0.0
        %619 = vmatpush1.xpose.msra.mxu0 0.0
        %620 = vmatprep.subr.mxu0 0.0
        %621 = vmatpush1.xpose.msra.mxu0 0.0
        %622 = vmatprep.subr.mxu0 0.0
        %623 = vmatpush1.xpose.msra.mxu0 0.0
        %624 = vmatprep.subr.mxu0 0.0
        %625 = vmatpush1.xpose.msra.mxu0 0.0
        %626 = vmatprep.subr.mxu0 0.0
        %627 = vmatpush1.xpose.msra.mxu0 0.0
        %628 = vmatprep.subr.mxu0 0.0
        %629 = vmatpush1.xpose.msra.mxu0 0.0
        %630 = vmatprep.subr.mxu0 0.0
        %631 = vmatpush1.xpose.msra.mxu0 0.0
        %632 = vmatprep.subr.mxu0 0.0
        %633 = vmatpush1.xpose.msra.mxu0 0.0
        %634 = vmatprep.subr.mxu0 0.0
        %635 = vmatpush1.xpose.msra.mxu0 0.0
        %636 = vmatprep.subr.mxu0 0.0
        %637 = vmatpush1.xpose.msra.mxu0 0.0
        %638 = vmatprep.subr.mxu0 0.0
        %639 = vmatpush1.xpose.msra.mxu0 0.0
        %640 = vmatprep.subr.mxu0 0.0
        %641 = vmatpush1.xpose.msra.mxu0 0.0
        %642 = vmatprep.subr.mxu0 0.0
        %643 = vmatpush1.xpose.msra.mxu0 0.0
        %644 = vmatprep.subr.mxu0 0.0
        %645 = vmatpush1.xpose.msra.mxu0 0.0
        %646 = vmatprep.subr.mxu0 0.0
        %647 = vmatpush1.xpose.msra.mxu0 0.0
        %648 = vmatprep.subr.mxu0 0.0
        %649 = vmatpush1.xpose.msra.mxu0 0.0
        %650 = vmatprep.subr.mxu0 0.0
        %651 = vmatpush1.xpose.msra.mxu0 0.0
        %652 = vmatprep.subr.mxu0 0.0
        %653 = vmatpush1.xpose.msra.mxu0 0.0
        %654 = vmatprep.subr.mxu0 0.0
        %655 = vmatpush1.xpose.msra.mxu0 0.0
        %656 = vmatprep.subr.mxu0 0.0
        %657 = vmatpush1.xpose.msra.mxu0 0.0
        %658 = vmatprep.subr.mxu0 0.0
        %659 = vmatpush1.xpose.msra.mxu0 0.0
        %660 = vmatprep.subr.mxu0 0.0
        %661 = vmatpush1.xpose.msra.mxu0 0.0
        %662 = vmatprep.subr.mxu0 0.0
        %663 = vmatpush1.xpose.msra.mxu0 0.0
        %664 = vmatprep.subr.mxu0 0.0
        %665 = vmatpush1.xpose.msra.mxu0 0.0
        %666 = vmatprep.mubr.f32.mxu0 0.0
        %667 = vmatmul.mubr.f32.gmra.mrb[0].mxu0 %v597
        %v668 = vpop.f32.mrb[0].mxu0
        %v669 = vadd.f32 0.0, %v668
        %v670 = vpop.f32.mrb[0].mxu0
        %671 = vdwg.mxu0
        %v672 = vsel %vm595, %v669, -inf
        %673 = vmax.xlane.f32.xlu0 %v672
        %v674 = vpop.xlane.xlu0 %673
        %v675 = vsub.f32 %v669, %v674
        %v676 = vmul.f32 %v675, 1.442695
        %v677 = vpow.pop %v676
        %v678 = vsel %vm595, %v677, 0.0
        %679 = vadd.xlane.f32.xlu0 %v678
        %v680 = vpop.xlane.xlu0 %679
        %v681 = vrcp.pop %v680
        %v682 = vmul.f32 %v677, %v681
        %v684 = vsel %vm595, %v682, 0
        %686 = vmatprep.subr.mxu0 0.0
        %687 = vmatpush1.msra.mxu0 %v592
        %688 = vmatprep.subr.mxu0 0.0
        %689 = vmatpush1.msra.mxu0 0.0
        %690 = vmatprep.subr.mxu0 0.0
        %691 = vmatpush1.msra.mxu0 0.0
        %692 = vmatprep.subr.mxu0 0.0
        %693 = vmatpush1.msra.mxu0 0.0
        %694 = vmatprep.subr.mxu0 0.0
        %695 = vmatpush1.msra.mxu0 0.0
        %696 = vmatprep.subr.mxu0 0.0
        %697 = vmatpush1.msra.mxu0 0.0
        %698 = vmatprep.subr.mxu0 0.0
        %699 = vmatpush1.msra.mxu0 0.0
        %700 = vmatprep.subr.mxu0 0.0
        %701 = vmatpush1.msra.mxu0 0.0
        %702 = vmatprep.subr.mxu0 0.0
        %703 = vmatpush1.msra.mxu0 0.0
        %704 = vmatprep.subr.mxu0 0.0
        %705 = vmatpush1.msra.mxu0 0.0
        %706 = vmatprep.subr.mxu0 0.0
        %707 = vmatpush1.msra.mxu0 0.0
        %708 = vmatprep.subr.mxu0 0.0
        %709 = vmatpush1.msra.mxu0 0.0
        %710 = vmatprep.subr.mxu0 0.0
        %711 = vmatpush1.msra.mxu0 0.0
        %712 = vmatprep.subr.mxu0 0.0
        %713 = vmatpush1.msra.mxu0 0.0
        %714 = vmatprep.subr.mxu0 0.0
        %715 = vmatpush1.msra.mxu0 0.0
        %716 = vmatprep.subr.mxu0 0.0
        %717 = vmatpush1.msra.mxu0 0.0
        %718 = vmatprep.subr.mxu0 0.0
        %719 = vmatpush1.msra.mxu0 0.0
        %720 = vmatprep.subr.mxu0 0.0
        %721 = vmatpush1.msra.mxu0 0.0
        %722 = vmatprep.subr.mxu0 0.0
        %723 = vmatpush1.msra.mxu0 0.0
        %724 = vmatprep.subr.mxu0 0.0
        %725 = vmatpush1.msra.mxu0 0.0
        %726 = vmatprep.subr.mxu0 0.0
        %727 = vmatpush1.msra.mxu0 0.0
        %728 = vmatprep.subr.mxu0 0.0
        %729 = vmatpush1.msra.mxu0 0.0
        %730 = vmatprep.subr.mxu0 0.0
        %731 = vmatpush1.msra.mxu0 0.0
        %732 = vmatprep.subr.mxu0 0.0
        %733 = vmatpush1.msra.mxu0 0.0
        %734 = vmatprep.subr.mxu0 0.0
        %735 = vmatpush1.msra.mxu0 0.0
        %736 = vmatprep.subr.mxu0 0.0
        %737 = vmatpush1.msra.mxu0 0.0
        %738 = vmatprep.subr.mxu0 0.0
        %739 = vmatpush1.msra.mxu0 0.0
        %740 = vmatprep.subr.mxu0 0.0
        %741 = vmatpush1.msra.mxu0 0.0
        %742 = vmatprep.subr.mxu0 0.0
        %743 = vmatpush1.msra.mxu0 0.0
        %744 = vmatprep.subr.mxu0 0.0
        %745 = vmatpush1.msra.mxu0 0.0
        %746 = vmatprep.subr.mxu0 0.0
        %747 = vmatpush1.msra.mxu0 0.0
        %748 = vmatprep.subr.mxu0 0.0
        %749 = vmatpush1.msra.mxu0 0.0
        %750 = vmatprep.mubr.f32.mxu0 0.0
        %751 = vmatmul.mubr.f32.gmra.mrb[0].mxu0 %v684
        %v752 = vpop.f32.mrb[0].mxu0
        %v753 = vadd.f32 0.0, %v752
        %v754 = vpop.f32.mrb[0].mxu0
        %755 = vdwg.mxu0
        %v756 = vld [vmem:[%s335] sm:$0xff]
        %v758 = vsel %vm595, %v753, 0
        %760 = vmatprep.subr.mxu0 0.0
        %761 = vmatpush1.msra.mxu0 %v756
        %762 = vmatprep.subr.mxu0 0.0
        %763 = vmatpush1.msra.mxu0 0.0
        %764 = vmatprep.subr.mxu0 0.0
        %765 = vmatpush1.msra.mxu0 0.0
        %766 = vmatprep.subr.mxu0 0.0
        %767 = vmatpush1.msra.mxu0 0.0
        %768 = vmatprep.subr.mxu0 0.0
        %769 = vmatpush1.msra.mxu0 0.0
        %770 = vmatprep.subr.mxu0 0.0
        %771 = vmatpush1.msra.mxu0 0.0
        %772 = vmatprep.subr.mxu0 0.0
        %773 = vmatpush1.msra.mxu0 0.0
        %774 = vmatprep.subr.mxu0 0.0
        %775 = vmatpush1.msra.mxu0 0.0
        %776 = vmatprep.subr.mxu0 0.0
        %777 = vmatpush1.msra.mxu0 0.0
        %778 = vmatprep.subr.mxu0 0.0
        %779 = vmatpush1.msra.mxu0 0.0
        %780 = vmatprep.subr.mxu0 0.0
        %781 = vmatpush1.msra.mxu0 0.0
        %782 = vmatprep.subr.mxu0 0.0
        %783 = vmatpush1.msra.mxu0 0.0
        %784 = vmatprep.subr.mxu0 0.0
        %785 = vmatpush1.msra.mxu0 0.0
        %786 = vmatprep.subr.mxu0 0.0
        %787 = vmatpush1.msra.mxu0 0.0
        %788 = vmatprep.subr.mxu0 0.0
        %789 = vmatpush1.msra.mxu0 0.0
        %790 = vmatprep.subr.mxu0 0.0
        %791 = vmatpush1.msra.mxu0 0.0
        %792 = vmatprep.subr.mxu0 0.0
        %793 = vmatpush1.msra.mxu0 0.0
        %794 = vmatprep.subr.mxu0 0.0
        %795 = vmatpush1.msra.mxu0 0.0
        %796 = vmatprep.subr.mxu0 0.0
        %797 = vmatpush1.msra.mxu0 0.0
        %798 = vmatprep.subr.mxu0 0.0
        %799 = vmatpush1.msra.mxu0 0.0
        %800 = vmatprep.subr.mxu0 0.0
        %801 = vmatpush1.msra.mxu0 0.0
        %802 = vmatprep.subr.mxu0 0.0
        %803 = vmatpush1.msra.mxu0 0.0
        %804 = vmatprep.subr.mxu0 0.0
        %805 = vmatpush1.msra.mxu0 0.0
        %806 = vmatprep.subr.mxu0 0.0
        %807 = vmatpush1.msra.mxu0 0.0
        %808 = vmatprep.subr.mxu0 0.0
        %809 = vmatpush1.msra.mxu0 0.0
        %810 = vmatprep.subr.mxu0 0.0
        %811 = vmatpush1.msra.mxu0 0.0
        %812 = vmatprep.subr.mxu0 0.0
        %813 = vmatpush1.msra.mxu0 0.0
        %814 = vmatprep.subr.mxu0 0.0
        %815 = vmatpush1.msra.mxu0 0.0
        %816 = vmatprep.subr.mxu0 0.0
        %817 = vmatpush1.msra.mxu0 0.0
        %818 = vmatprep.subr.mxu0 0.0
        %819 = vmatpush1.msra.mxu0 0.0
        %820 = vmatprep.subr.mxu0 0.0
        %821 = vmatpush1.msra.mxu0 0.0
        %822 = vmatprep.subr.mxu0 0.0
        %823 = vmatpush1.msra.mxu0 0.0
        %824 = vmatprep.mubr.f32.mxu0 0.0
        %825 = vmatmul.mubr.f32.gmra.mrb[0].mxu0 %v758
        %v826 = vpop.f32.mrb[0].mxu0
        %v827 = vadd.f32 0.0, %v826
        %v828 = vpop.f32.mrb[0].mxu0
        %829 = vdwg.mxu0
        %p830 = scmp.eq.s32.totalorder %s25, 0
        // Predicated region
        $region45: #{tpu_custom_call.1} parent=43 // pred_check
          %p831 = pneg %p830
        $region46: #{tpu_custom_call.1} parent=43 // pred_check_branch
          %833 = sbr.rel (%p831) target = $region48
        $region47: #{tpu_custom_call.1} parent=43 // pred_region
          %834 = vst [vmem:[#allocation2] sm:$0xff] 0.0
        $region48: #{tpu_custom_call.1} parent=43 // pred_fallthru
          _
        %v835 = vld [vmem:[#allocation2] sm:$0xff]
        %v836 = vadd.f32 %v835, %v827
        %837 = vst [vmem:[#allocation2] sm:$0xff] %v836
        %p838 = scmp.eq.s32.totalorder %s25, 5
        // Predicated region
        $region49: #{tpu_custom_call.1} parent=43 // pred_check
          %p839 = pneg %p838
        $region50: #{tpu_custom_call.1} parent=43 // pred_check_branch
          %841 = sbr.rel (%p839) target = $region52
        $region51: #{tpu_custom_call.1} parent=43 // pred_region
          %v842 = vld [vmem:[#allocation2] sm:$0xff]
          %v843 = vld [vmem:[%s5] sm:$0x1]
          %v845 = vlaneseq
          %v846 = vshrl.u32 %v845, 7
          %v847 = vsub.s32 0, %v846
          %v848 = vrot.slane %v843, %v847
          %v850 = vadd.f32 %v842, %v848
          %851 = vst [vmem:[%s312] sm:$0xff] %v850
        $region52: #{tpu_custom_call.1} parent=43 // pred_fallthru
          _
        %s852 = sand.u32 %s191, 1
        %s853 = scalar_lea.sflag [#allocation4], %s852
        %s854 = sand.u32 %s191, 1
        %s855 = smul.addr %s854, 8
        %s856 = scalar_lea.vmem [#allocation3], %s855
        // Predicated region
        $region53: #{tpu_custom_call.1} parent=43 // pred_check
          %p857 = pneg %p201
        $region54: #{tpu_custom_call.1} parent=43 // pred_check_branch
          %859 = sbr.rel (%p857) target = $region56
        $region55: #{tpu_custom_call.1} parent=43 // pred_region
          %s861 = ssub.s32 128, 128
          %862 = vsyncadd %s853, %s861
          %s863 = smul.addr %s24, 128
          %s864 = scalar_lea.hbm %s6, %s863
          %s866 = sshll.u32 %s856, 4
          %s867 = int_to_ptr.vmem [resolvable:$true] %s866
          %869 = dma.vmem_to_hbm [thread:$0]  %s867, 128, %s864, %s853
        $region56: #{tpu_custom_call.1} parent=43 // pred_fallthru
          _
      $region44: #{tpu_custom_call.1} parent=5 // pred_fallthru
        _
      %p870 = scmp.le.s32.totalorder 2, %s15
      // Predicated region
      $region57: #{tpu_custom_call.1} parent=5 // pred_check
        %p871 = pneg %p870
      $region58: #{tpu_custom_call.1} parent=5 // pred_check_branch
        %873 = sbr.rel (%p871) target = $region60
      $region59: #{tpu_custom_call.1} parent=5 // pred_region
        %s874 = ssub.s32 %s15, 2
        // Predicated region
        $region61: #{tpu_custom_call.1} parent=59 // pred_check
          %p875 = pneg %p207
        $region62: #{tpu_custom_call.1} parent=59 // pred_check_branch
          %877 = sbr.rel (%p875) target = $region64
        $region63: #{tpu_custom_call.1} parent=59 // pred_region
          %s878 = sand.u32 %s192, 1
          %s879 = scalar_lea.sflag [#allocation4], %s878
          %s880 = sand.u32 %s192, 1
          %s881 = smul.addr %s880, 8
          %s882 = scalar_lea.vmem [#allocation3], %s881
          %883 = dma.done %s879, 128
        $region64: #{tpu_custom_call.1} parent=59 // pred_fallthru
          _
      $region60: #{tpu_custom_call.1} parent=5 // pred_fallthru
        _
    $region6: #{tpu_custom_call.1} parent=1 // loop_footer
      %s19 = sadd.s32 1, %s15
    $region7: #{tpu_custom_call.1} parent=1 // loop_footer_branch
      %14 = sbr.rel target = $region3
    $region8: #{tpu_custom_call.1} parent=1 // loop_exit
      _
    %884 = vsyncpa [#allocation4], 1
    %s885 = scalar_lea.sflag [#allocation4], 1
    %886 = vsyncpa %s885, 1

</llo_original>
